<compile_context>
chip_gen: v6e
topology: v6e:2x2x1
jax: 0.10.0
libtpu: 0.0.40
codegen_flags: <defaults>
</compile_context>

<pallas_src>
import jax
import jax.numpy as jnp
from jax.experimental import pallas as pl
from jax.experimental.pallas import tpu as pltpu


# --------------------------------------------------------------------------
# Kernels
# --------------------------------------------------------------------------
def _make_resident_kernel(epilogue_dtype):
    """Path A: full W1/W2 resident in VMEM, 1-D grid over row tiles."""
    def kernel(x_ref, w1_ref, b1_ref, w2_ref, b2_ref, o_ref):
        h = jnp.dot(x_ref[...], w1_ref[...],
                    preferred_element_type=jnp.float32)
        h = h.astype(epilogue_dtype) + b1_ref[...].astype(epilogue_dtype)
        h = jnp.maximum(h, 0.0)                                   # ReLU
        y = jnp.dot(h.astype(w2_ref.dtype), w2_ref[...],
                    preferred_element_type=jnp.float32)
        o_ref[...] = (y + b2_ref[...].astype(jnp.float32)).astype(o_ref.dtype)
    return kernel


def _make_tiled_kernel(epilogue_dtype):
    """Path B: 2-D grid (row tiles x hidden tiles) with f32 accumulator."""
    def kernel(x_ref, w1_ref, b1_ref, w2_ref, b2_ref, o_ref, acc_ref):
        j = pl.program_id(1)

        @pl.when(j == 0)
        def _init():
            acc_ref[...] = jnp.zeros_like(acc_ref)

        # (tm, C) @ (C, th) -> (tm, th), f32 accumulate on MXU.
        h = jnp.dot(x_ref[...], w1_ref[...],
                    preferred_element_type=jnp.float32)
        h = h.astype(epilogue_dtype) + b1_ref[...].astype(epilogue_dtype)
        h = jnp.maximum(h, 0.0)                                   # ReLU

        # (tm, th) @ (th, C) accumulated into resident (tm, C) f32 scratch.
        acc_ref[...] += jnp.dot(h.astype(w2_ref.dtype), w2_ref[...],
                                preferred_element_type=jnp.float32)

        @pl.when(j == pl.num_programs(1) - 1)
        def _finalize():
            o_ref[...] = (acc_ref[...]
                          + b2_ref[...].astype(jnp.float32)).astype(o_ref.dtype)
    return kernel


# --------------------------------------------------------------------------
# Tile planning helpers
# --------------------------------------------------------------------------
def _round_up(x, m):
    return -(-x // m) * m


def _vmem_budget_bytes():
    """~75% of physical VMEM: 96 MiB on v5e/v6e, 48 MiB on v7x."""
    try:
        cap = pltpu.get_tpu_info().vmem_capacity_bytes
    except Exception:
        cap = 64 * 1024 * 1024
    return int(cap * 0.75)


def _epilogue_dtype(w_dtype):
    """bf16 epilogue on v6e/v7x (packed VPU); f32 on v5* (no bf16 VPU)."""
    if jnp.dtype(w_dtype) != jnp.dtype(jnp.bfloat16):
        return jnp.float32
    try:
        kind = jax.devices()[0].device_kind.lower()
    except Exception:
        kind = ""
    if "v5" in kind:
        return jnp.float32
    return jnp.bfloat16


def _choose_row_tiling(M, tm_req):
    """128-aligned row tile <= tm_req; keep >=2 row programs when M allows
    (v7x has 2 TensorCores sharded over the 'parallel' axis)."""
    tm_req = max(128, (tm_req // 128) * 128)
    Mp = _round_up(max(M, 1), 128)
    n128 = Mp // 128
    if n128 >= 2:
        tm = max(128, min(tm_req, (n128 // 2) * 128))
    else:
        tm = 128
    Mp = _round_up(Mp, tm)
    return tm, Mp


def _pick_hidden_tile(H, target):
    """Largest divisor of H that is a multiple of 256 (preferred) or 128 and
    <= target; falls back to the full H (always a legal full-extent block)."""
    target = min(target, H)
    for align in (256, 128):
        t = (target // align) * align
        while t >= align:
            if H % t == 0:
                return t
            t -= align
    return H


def _vmem_estimate_resident(tm, C, H, act_bytes, w_bytes):
    weights = (C * H + H * C + H + C) * w_bytes
    x_db = 2 * tm * C * act_bytes
    out_db = 2 * tm * C * act_bytes
    h_tmp = tm * H * (4 + w_bytes)        # f32 matmul result + cast copy
    return weights + x_db + out_db + h_tmp


def _vmem_estimate_tiled(tm, th, C, H, act_bytes, w_bytes):
    acc = tm * C * 4
    x_db = 2 * tm * C * act_bytes
    out_db = 2 * tm * C * act_bytes
    w1_db = 2 * C * th * w_bytes
    w2_db = 2 * th * C * w_bytes
    b_db = 2 * (th + C) * w_bytes
    h_tmp = tm * th * (4 + w_bytes)
    return acc + x_db + out_db + w1_db + w2_db + b_db + h_tmp


def _plan(M, C, H, act_bytes, w_bytes, plan_budget, tm_req, th_req,
          force_resident):
    tm, _ = _choose_row_tiling(M, tm_req)
    th = _pick_hidden_tile(H, th_req)

    resident = force_resident
    if resident is None:
        resident = (_vmem_estimate_resident(tm, C, H, act_bytes, w_bytes)
                    <= plan_budget)

    if resident:
        while (_vmem_estimate_resident(tm, C, H, act_bytes, w_bytes)
               > plan_budget and tm > 128):
            tm = max(128, ((tm // 2) // 128) * 128)
    else:
        while (_vmem_estimate_tiled(tm, th, C, H, act_bytes, w_bytes)
               > plan_budget and tm > 128):
            tm = max(128, ((tm // 2) // 128) * 128)
        prev = None
        while (_vmem_estimate_tiled(tm, th, C, H, act_bytes, w_bytes)
               > plan_budget and th > 128 and th != prev):
            prev = th
            th = _pick_hidden_tile(H, max(128, th // 2))

    Mp = _round_up(max(M, 1), tm)
    return tm, th, Mp, resident


# --------------------------------------------------------------------------
# Wrapper
# --------------------------------------------------------------------------
def feed_forward(x, w1, b1, w2, b2, *, dropout=0.0, tm=None, th=None,
                 weights_resident=None):
    """x: (..., C). w1: (C, 4C), b1: (1, 4C), w2: (4C, C), b2: (1, C).
    Returns same shape/dtype as x. Dropout must be 0.0 (inference path)."""
    # TODO(synk): training-mode dropout not implemented; fail loudly.
    assert dropout == 0.0, "training-mode dropout not implemented"

    orig_shape = x.shape
    C = orig_shape[-1]
    H = w1.shape[1]

    x2 = x.reshape(-1, C)                      # (M, C)
    M = x2.shape[0]

    act_bytes = jnp.dtype(x.dtype).itemsize
    w_bytes = jnp.dtype(w1.dtype).itemsize

    vmem_limit = _vmem_budget_bytes()
    plan_budget = int(vmem_limit * 0.85)       # headroom for compiler temps

    if tm is None:
        tm = 512                                # arithmetic-intensity knob
    if th is None:
        th = 512 if vmem_limit > (64 << 20) else 256   # smaller on v7x

    tm, th, Mp, resident = _plan(M, C, H, act_bytes, w_bytes, plan_budget,
                                 tm, th, weights_resident)
    epi = _epilogue_dtype(w1.dtype)

    # Zero-pad rows up to a tile multiple (garbage rows sliced off below).
    x2p = jnp.pad(x2, ((0, Mp - M), (0, 0))) if Mp != M else x2

    cparams = pltpu.CompilerParams(
        dimension_semantics=("parallel",) if resident
        else ("parallel", "arbitrary"),
        vmem_limit_bytes=int(vmem_limit),
    )

    if resident:
        # Path A: weights DMA'd once, stay resident across all row tiles.
        out = pl.pallas_call(
            _make_resident_kernel(epi),
            out_shape=jax.ShapeDtypeStruct((Mp, C), x.dtype),
            grid_spec=pltpu.PrefetchScalarGridSpec(
                num_scalar_prefetch=0,
                grid=(Mp // tm,),
                in_specs=[
                    pl.BlockSpec((tm, C), lambda i: (i, 0)),   # x rows
                    pl.BlockSpec((C, H), lambda i: (0, 0)),    # W1 (resident)
                    pl.BlockSpec((1, H), lambda i: (0, 0)),    # b1 (resident)
                    pl.BlockSpec((H, C), lambda i: (0, 0)),    # W2 (resident)
                    pl.BlockSpec((1, C), lambda i: (0, 0)),    # b2 (resident)
                ],
                out_specs=pl.BlockSpec((tm, C), lambda i: (i, 0)),
            ),
            compiler_params=cparams,
        )(x2p, w1, b1, w2, b2)
    else:
        # Path B: hidden-dim reduction grid axis with f32 accumulator.
        out = pl.pallas_call(
            _make_tiled_kernel(epi),
            out_shape=jax.ShapeDtypeStruct((Mp, C), x.dtype),
            grid_spec=pltpu.PrefetchScalarGridSpec(
                num_scalar_prefetch=0,
                grid=(Mp // tm, H // th),
                in_specs=[
                    pl.BlockSpec((tm, C), lambda i, j: (i, 0)),   # x rows
                    pl.BlockSpec((C, th), lambda i, j: (0, j)),   # W1 col tile
                    pl.BlockSpec((1, th), lambda i, j: (0, j)),   # b1 tile
                    pl.BlockSpec((th, C), lambda i, j: (j, 0)),   # W2 row tile
                    pl.BlockSpec((1, C), lambda i, j: (0, 0)),    # b2
                ],
                out_specs=pl.BlockSpec((tm, C), lambda i, j: (i, 0)),
                scratch_shapes=[pltpu.VMEM((tm, C), jnp.float32)],
            ),
            compiler_params=cparams,
        )(x2p, w1, b1, w2, b2)

    return out[:M].reshape(orig_shape)


# --------------------------------------------------------------------------
def init_params(key, n_features, dtype=jnp.bfloat16):
    C, H = n_features, 4 * n_features
    k1, k2, k3, k4 = jax.random.split(key, 4)
    w1 = (jax.random.normal(k1, (C, H), jnp.float32) * C ** -0.5).astype(dtype)
    b1 = (jax.random.normal(k2, (1, H), jnp.float32) * 0.1).astype(dtype)
    w2 = (jax.random.normal(k3, (H, C), jnp.float32) * H ** -0.5).astype(dtype)
    b2 = (jax.random.normal(k4, (1, C), jnp.float32) * 0.1).astype(dtype)
    return w1, b1, w2, b2


def _reference(x, w1, b1, w2, b2, epilogue_dtype):
    """Plain-JAX reference mirroring the kernel's f32-accum / epilogue dtype."""
    h = jnp.dot(x.astype(jnp.float32), w1.astype(jnp.float32))
    h = h.astype(epilogue_dtype) + b1.astype(epilogue_dtype)
    h = jnp.maximum(h, 0.0)
    y = (jnp.dot(h.astype(jnp.float32), w2.astype(jnp.float32))
         + b2.astype(jnp.float32))
    return y


# --------------------------------------------------------------------------
if __name__ == "__main__":
    B, T, C = 2, 8, 128          # batch, seq, n_features (lane-dense C)

    key = jax.random.PRNGKey(0)
    kx, kp = jax.random.split(key)

    x = jax.random.normal(kx, (B, T, C), jnp.float32).astype(jnp.bfloat16)
    w1, b1, w2, b2 = init_params(kp, C)

    epi = _epilogue_dtype(w1.dtype)
    ref = _reference(x, w1, b1, w2, b2, epi)

    # Path A: weights fully VMEM-resident (auto-selected at this small C).
    y_res = feed_forward(x, w1, b1, w2, b2, dropout=0.0)
    # Path B: hidden-dim-tiled reduction path (forced; th=256 -> 2 hidden
    # steps so the accumulator init/finalize logic is exercised).
    y_til = feed_forward(x, w1, b1, w2, b2, dropout=0.0, th=256,
                         weights_resident=False)
    jax.block_until_ready((y_res, y_til))

    for y in (y_res, y_til):
        assert y.shape == (B, T, C) and y.dtype == x.dtype
        yf = y.astype(jnp.float32)
        assert not bool(jnp.isnan(yf).any())
        assert bool(jnp.allclose(yf, ref, atol=5e-2, rtol=5e-2)), \
            "mismatch vs reference"

    print("KERNEL_OK")
</pallas_src>

<mosaic_0001>
module attributes {stable_mosaic.version = 11 : i64} {
  func.func @kernel(%arg0: i32, %arg1: memref<128x128xbf16, #tpu.memory_space<vmem>>, %arg2: memref<128x512xbf16, #tpu.memory_space<vmem>>, %arg3: memref<1x512xbf16, #tpu.memory_space<vmem>>, %arg4: memref<512x128xbf16, #tpu.memory_space<vmem>>, %arg5: memref<1x128xbf16, #tpu.memory_space<vmem>>, %arg6: memref<128x128xbf16, #tpu.memory_space<vmem>>) attributes {dimension_semantics = [#tpu.dimension_semantics<parallel>], iteration_bounds = array<i64: 1>, scalar_prefetch = 0 : i64, scratch_operands = 0 : i64, tpu.core_type = #tpu.core_type<tc>, window_params = [{transform_indices = @transform_0, window_bounds = array<i64: 128, 128>}, {pipeline_mode = #tpu.pipeline_mode<synchronous>, transform_indices = @transform_1, window_bounds = array<i64: 128, 512>}, {pipeline_mode = #tpu.pipeline_mode<synchronous>, transform_indices = @transform_2, window_bounds = array<i64: 1, 512>}, {pipeline_mode = #tpu.pipeline_mode<synchronous>, transform_indices = @transform_3, window_bounds = array<i64: 512, 128>}, {pipeline_mode = #tpu.pipeline_mode<synchronous>, transform_indices = @transform_4, window_bounds = array<i64: 1, 128>}, {transform_indices = @transform_5, window_bounds = array<i64: 128, 128>}]} {
    %c0 = arith.constant 0 : index
    %c0_0 = arith.constant 0 : index
    %0 = vector.load %arg1[%c0, %c0_0] : memref<128x128xbf16, #tpu.memory_space<vmem>>, vector<128x128xbf16>
    %c0_1 = arith.constant 0 : index
    %c0_2 = arith.constant 0 : index
    %1 = vector.load %arg2[%c0_1, %c0_2] : memref<128x512xbf16, #tpu.memory_space<vmem>>, vector<128x512xbf16>
    %cst = arith.constant dense<0.000000e+00> : vector<128x512xf32>
    %2 = tpu.matmul %0, %1, %cst {dimension_numbers = #tpu.dot_dimension_numbers<[1], [0], [0], [1], [0, 0, 1, 1], [], []>} : vector<128x128xbf16>, vector<128x512xbf16>, vector<128x512xf32> -> vector<128x512xf32>
    %3 = arith.truncf %2 : vector<128x512xf32> to vector<128x512xbf16>
    %c0_3 = arith.constant 0 : index
    %c0_4 = arith.constant 0 : index
    %4 = vector.load %arg3[%c0_3, %c0_4] : memref<1x512xbf16, #tpu.memory_space<vmem>>, vector<1x512xbf16>
    %5 = vector.broadcast %4 : vector<1x512xbf16> to vector<128x512xbf16>
    %6 = arith.addf %3, %5 : vector<128x512xbf16>
    %cst_5 = arith.constant 0.000000e+00 : bf16
    %7 = vector.broadcast %cst_5 : bf16 to vector<128x512xbf16>
    %8 = arith.maximumf %6, %7 : vector<128x512xbf16>
    %c0_6 = arith.constant 0 : index
    %c0_7 = arith.constant 0 : index
    %9 = vector.load %arg4[%c0_6, %c0_7] : memref<512x128xbf16, #tpu.memory_space<vmem>>, vector<512x128xbf16>
    %cst_8 = arith.constant dense<0.000000e+00> : vector<128x128xf32>
    %10 = tpu.matmul %8, %9, %cst_8 {dimension_numbers = #tpu.dot_dimension_numbers<[1], [0], [0], [1], [0, 0, 1, 1], [], []>} : vector<128x512xbf16>, vector<512x128xbf16>, vector<128x128xf32> -> vector<128x128xf32>
    %c0_9 = arith.constant 0 : index
    %c0_10 = arith.constant 0 : index
    %11 = vector.load %arg5[%c0_9, %c0_10] : memref<1x128xbf16, #tpu.memory_space<vmem>>, vector<1x128xbf16>
    %12 = arith.extf %11 : vector<1x128xbf16> to vector<1x128xf32>
    %13 = vector.broadcast %12 : vector<1x128xf32> to vector<128x128xf32>
    %14 = arith.addf %10, %13 : vector<128x128xf32>
    %15 = arith.truncf %14 : vector<128x128xf32> to vector<128x128xbf16>
    %c0_11 = arith.constant 0 : index
    %c0_12 = arith.constant 0 : index
    %16 = vector.load %arg6[%c0_11, %c0_12] : memref<128x128xbf16, #tpu.memory_space<vmem>>, vector<128x128xbf16>
    tpu.vector_store %arg6[%c0_11, %c0_12], %15 {strides = array<i32>} : memref<128x128xbf16, #tpu.memory_space<vmem>>, vector<128x128xbf16>,
    return
  }
  func.func @transform_0(%arg0: i32) -> (i32, i32) {
    %c0_i32 = arith.constant 0 : i32
    %c0_i32_0 = arith.constant 0 : i32
    return %arg0, %c0_i32 : i32, i32
  }
  func.func @transform_1(%arg0: i32) -> (i32, i32) {
    %c0_i32 = arith.constant 0 : i32
    %c0_i32_0 = arith.constant 0 : i32
    %c0_i32_1 = arith.constant 0 : i32
    return %c0_i32, %c0_i32_0 : i32, i32
  }
  func.func @transform_2(%arg0: i32) -> (i32, i32) {
    %c0_i32 = arith.constant 0 : i32
    %c0_i32_0 = arith.constant 0 : i32
    %c0_i32_1 = arith.constant 0 : i32
    return %c0_i32, %c0_i32_0 : i32, i32
  }
  func.func @transform_3(%arg0: i32) -> (i32, i32) {
    %c0_i32 = arith.constant 0 : i32
    %c0_i32_0 = arith.constant 0 : i32
    %c0_i32_1 = arith.constant 0 : i32
    return %c0_i32, %c0_i32_0 : i32, i32
  }
  func.func @transform_4(%arg0: i32) -> (i32, i32) {
    %c0_i32 = arith.constant 0 : i32
    %c0_i32_0 = arith.constant 0 : i32
    %c0_i32_1 = arith.constant 0 : i32
    return %c0_i32, %c0_i32_0 : i32, i32
  }
  func.func @transform_5(%arg0: i32) -> (i32, i32) {
    %c0_i32 = arith.constant 0 : i32
    %c0_i32_0 = arith.constant 0 : i32
    return %arg0, %c0_i32 : i32, i32
  }
}

</mosaic_0001>

<llo_original>
// kernel: tpu_custom_call.1
$region0: #{tpu_custom_call.1}
  #allocation0 [shape = 'u32[]', space=smem, size = 0x4, offset = 0x4, fixed_abs, tag = 'smem constant byte address 0x4 - core index']
  #allocation1 [shape = 'u32[144,128]{1,0:T(1,128)}', space=vmem, size = 0x12000, scoped, tag = 'internal scratch']
  %s0 = inlined_call_operand.hbm [shape: bf16[128,128], index: 0, kind: input, shape index: {}]
  %s1 = inlined_call_operand.hbm [shape: bf16[128,512], index: 1, kind: input, shape index: {}]
  %s2 = inlined_call_operand.hbm [shape: bf16[1,512], index: 2, kind: input, shape index: {}]
  %s3 = inlined_call_operand.hbm [shape: bf16[512,128], index: 3, kind: input, shape index: {}]
  %s4 = inlined_call_operand.vmem [shape: bf16[1,128], index: 4, kind: input, shape index: {}]
  %s5 = inlined_call_operand.hbm [shape: bf16[128,128], index: 5, kind: output, shape index: {}]
  %s6 = sld [smem:[#allocation0]]
  $region46: #{tpu_custom_call.1} parent=0
    _
  %s8 = ssub.s32 1, %s6
  %s9 = scalar_select 0, %s8, %s6
  $region1: #{tpu_custom_call.1} parent=0
    #allocation2 [shape = 'u8[32768]{0}', space=vmem, size = 0x8000, scoped, tag = 'input window, operand 0, single buffered']
    #allocation3 [shape = 's32[1]{0}', space=sflag, size = 0x4, scoped, tag = 'scoped memory for tpu_custom_call.1']
    #allocation4 [shape = 's32[1]{0}', space=sflag, size = 0x4, scoped, tag = 'scoped memory for tpu_custom_call.1']
    #allocation5 [shape = 'u8[131072]{0}', space=vmem, size = 0x20000, scoped, tag = 'input window, operand 1, single buffered']
    #allocation6 [shape = 's32[1]{0}', space=sflag, size = 0x4, scoped, tag = 'scoped memory for tpu_custom_call.1']
    #allocation7 [shape = 'u8[2048]{0}', space=vmem, size = 0x800, scoped, tag = 'input window, operand 2, single buffered']
    #allocation8 [shape = 'u8[131072]{0}', space=vmem, size = 0x20000, scoped, tag = 'input window, operand 3, single buffered']
    #allocation9 [shape = 's32[1]{0}', space=sflag, size = 0x4, scoped, tag = 'scoped memory for tpu_custom_call.1']
    #allocation10 [shape = 'u8[32768]{0}', space=vmem, size = 0x8000, scoped, tag = 'output window, operand 0, single buffered']
    %10 = vsyncpa [#allocation3], 0
    %11 = vsyncpa [#allocation6], 0
    %12 = vsyncpa [#allocation9], 0
    %13 = vsyncpa [#allocation4], 0
    // Predicated region
    $region2: #{tpu_custom_call.1} parent=1 // pred_check
      _
    $region3: #{tpu_custom_call.1} parent=1 // pred_check_branch
      %15 = sbr.rel (0) target = $region5
    $region4: #{tpu_custom_call.1} parent=1 // pred_region
      %s17 = ssub.s32 1024, 1024
      %18 = vsyncadd [#allocation3], %s17
      %s19 = sshll.u32 [#allocation2], 4
      %s20 = int_to_ptr.vmem [resolvable:$true] %s19
      %25 = dma.hbm_to_vmem [thread:$0]  %s0, 1024, %s20, [#allocation3], 64, 64, 4
    $region5: #{tpu_custom_call.1} parent=1 // pred_fallthru
      _
    // Predicated region
    $region6: #{tpu_custom_call.1} parent=1 // pred_check
      _
    $region7: #{tpu_custom_call.1} parent=1 // pred_check_branch
      %27 = sbr.rel (0) target = $region9
    $region8: #{tpu_custom_call.1} parent=1 // pred_region
      %s29 = ssub.s32 4096, 4096
      %30 = vsyncadd [#allocation6], %s29
      %s31 = sshll.u32 [#allocation5], 4
      %s32 = int_to_ptr.vmem [resolvable:$true] %s31
      %37 = dma.hbm_to_vmem [thread:$0]  %s1, 4096, %s32, [#allocation6], 256, 256, 16
    $region9: #{tpu_custom_call.1} parent=1 // pred_fallthru
      _
    // Predicated region
    $region10: #{tpu_custom_call.1} parent=1 // pred_check
      _
    $region11: #{tpu_custom_call.1} parent=1 // pred_check_branch
      %39 = sbr.rel (0) target = $region13
    $region12: #{tpu_custom_call.1} parent=1 // pred_region
      %s41 = ssub.s32 64, 64
      %42 = vsyncadd [#allocation6], %s41
      %s44 = sshll.u32 [#allocation7], 4
      %s45 = int_to_ptr.vmem [resolvable:$true] %s44
      %47 = dma.hbm_to_vmem [thread:$0]  %s2, 64, %s45, [#allocation6]
    $region13: #{tpu_custom_call.1} parent=1 // pred_fallthru
      _
    // Predicated region
    $region14: #{tpu_custom_call.1} parent=1 // pred_check
      _
    $region15: #{tpu_custom_call.1} parent=1 // pred_check_branch
      %49 = sbr.rel (0) target = $region17
    $region16: #{tpu_custom_call.1} parent=1 // pred_region
      %s51 = ssub.s32 4096, 4096
      %52 = vsyncadd [#allocation9], %s51
      %s53 = sshll.u32 [#allocation8], 4
      %s54 = int_to_ptr.vmem [resolvable:$true] %s53
      %59 = dma.hbm_to_vmem [thread:$0]  %s3, 4096, %s54, [#allocation9], 64, 64, 4
    $region17: #{tpu_custom_call.1} parent=1 // pred_fallthru
      _
    // Predicated region
    $region18: #{tpu_custom_call.1} parent=1 // pred_check
      _
    $region19: #{tpu_custom_call.1} parent=1 // pred_check_branch
      %61 = sbr.rel (0) target = $region21
    $region20: #{tpu_custom_call.1} parent=1 // pred_region
      _
    $region21: #{tpu_custom_call.1} parent=1 // pred_fallthru
      _
    // Predicated region
    $region22: #{tpu_custom_call.1} parent=1 // pred_check
      _
    $region23: #{tpu_custom_call.1} parent=1 // pred_check_branch
      %63 = sbr.rel (0) target = $region25
    $region24: #{tpu_custom_call.1} parent=1 // pred_region
      %64 = dma.done [#allocation3], 1024
    $region25: #{tpu_custom_call.1} parent=1 // pred_fallthru
      _
    // Predicated region
    $region26: #{tpu_custom_call.1} parent=1 // pred_check
      _
    $region27: #{tpu_custom_call.1} parent=1 // pred_check_branch
      %66 = sbr.rel (0) target = $region29
    $region28: #{tpu_custom_call.1} parent=1 // pred_region
      %67 = dma.done [#allocation6], 4096
    $region29: #{tpu_custom_call.1} parent=1 // pred_fallthru
      _
    // Predicated region
    $region30: #{tpu_custom_call.1} parent=1 // pred_check
      _
    $region31: #{tpu_custom_call.1} parent=1 // pred_check_branch
      %69 = sbr.rel (0) target = $region33
    $region32: #{tpu_custom_call.1} parent=1 // pred_region
      %70 = dma.done [#allocation6], 64
    $region33: #{tpu_custom_call.1} parent=1 // pred_fallthru
      _
    // Predicated region
    $region34: #{tpu_custom_call.1} parent=1 // pred_check
      _
    $region35: #{tpu_custom_call.1} parent=1 // pred_check_branch
      %72 = sbr.rel (0) target = $region37
    $region36: #{tpu_custom_call.1} parent=1 // pred_region
      %73 = dma.done [#allocation9], 4096
    $region37: #{tpu_custom_call.1} parent=1 // pred_fallthru
      _
    %v75 = vld [vmem:[#allocation2] sm:$0xf]
    %v76 = vld [vmem:[#allocation2 + $0x4] sm:$0xf]
    %v77 = vld [vmem:[#allocation2 + $0x8] sm:$0xf]
    %v78 = vld [vmem:[#allocation2 + $0xc] sm:$0xf]
    %v79 = vld [vmem:[#allocation2 + $0x10] sm:$0xf]
    %v80 = vld [vmem:[#allocation2 + $0x14] sm:$0xf]
    %v81 = vld [vmem:[#allocation2 + $0x18] sm:$0xf]
    %v82 = vld [vmem:[#allocation2 + $0x1c] sm:$0xf]
    %v83 = vld [vmem:[#allocation2 + $0x20] sm:$0xf]
    %v84 = vld [vmem:[#allocation2 + $0x24] sm:$0xf]
    %v85 = vld [vmem:[#allocation2 + $0x28] sm:$0xf]
    %v86 = vld [vmem:[#allocation2 + $0x2c] sm:$0xf]
    %v87 = vld [vmem:[#allocation2 + $0x30] sm:$0xf]
    %v88 = vld [vmem:[#allocation2 + $0x34] sm:$0xf]
    %v89 = vld [vmem:[#allocation2 + $0x38] sm:$0xf]
    %v90 = vld [vmem:[#allocation2 + $0x3c] sm:$0xf]
    %v91 = vld [vmem:[#allocation5] sm:$0xff]
    %v92 = vld [vmem:[#allocation5 + $0x8] sm:$0xff]
    %v93 = vld [vmem:[#allocation5 + $0x10] sm:$0xff]
    %v94 = vld [vmem:[#allocation5 + $0x18] sm:$0xff]
    %v95 = vld [vmem:[#allocation5 + $0x20] sm:$0xff]
    %v96 = vld [vmem:[#allocation5 + $0x28] sm:$0xff]
    %v97 = vld [vmem:[#allocation5 + $0x30] sm:$0xff]
    %v98 = vld [vmem:[#allocation5 + $0x38] sm:$0xff]
    %v99 = vld [vmem:[#allocation5 + $0x40] sm:$0xff]
    %v100 = vld [vmem:[#allocation5 + $0x48] sm:$0xff]
    %v101 = vld [vmem:[#allocation5 + $0x50] sm:$0xff]
    %v102 = vld [vmem:[#allocation5 + $0x58] sm:$0xff]
    %v103 = vld [vmem:[#allocation5 + $0x60] sm:$0xff]
    %v104 = vld [vmem:[#allocation5 + $0x68] sm:$0xff]
    %v105 = vld [vmem:[#allocation5 + $0x70] sm:$0xff]
    %v106 = vld [vmem:[#allocation5 + $0x78] sm:$0xff]
    %v107 = vld [vmem:[#allocation5 + $0x80] sm:$0xff]
    %v108 = vld [vmem:[#allocation5 + $0x88] sm:$0xff]
    %v109 = vld [vmem:[#allocation5 + $0x90] sm:$0xff]
    %v110 = vld [vmem:[#allocation5 + $0x98] sm:$0xff]
    %v111 = vld [vmem:[#allocation5 + $0xa0] sm:$0xff]
    %v112 = vld [vmem:[#allocation5 + $0xa8] sm:$0xff]
    %v113 = vld [vmem:[#allocation5 + $0xb0] sm:$0xff]
    %v114 = vld [vmem:[#allocation5 + $0xb8] sm:$0xff]
    %v115 = vld [vmem:[#allocation5 + $0xc0] sm:$0xff]
    %v116 = vld [vmem:[#allocation5 + $0xc8] sm:$0xff]
    %v117 = vld [vmem:[#allocation5 + $0xd0] sm:$0xff]
    %v118 = vld [vmem:[#allocation5 + $0xd8] sm:$0xff]
    %v119 = vld [vmem:[#allocation5 + $0xe0] sm:$0xff]
    %v120 = vld [vmem:[#allocation5 + $0xe8] sm:$0xff]
    %v121 = vld [vmem:[#allocation5 + $0xf0] sm:$0xff]
    %v122 = vld [vmem:[#allocation5 + $0xf8] sm:$0xff]
    %v139 = vunpack.c.l.b16 %v75
    %v140 = vunpack.c.l.b16 %v76
    %v141 = vunpack.c.l.b16 %v77
    %v142 = vunpack.c.l.b16 %v78
    %v143 = vunpack.c.l.b16 %v79
    %v144 = vunpack.c.l.b16 %v80
    %v145 = vunpack.c.l.b16 %v81
    %v146 = vunpack.c.l.b16 %v82
    %v147 = vunpack.c.l.b16 %v83
    %v148 = vunpack.c.l.b16 %v84
    %v149 = vunpack.c.l.b16 %v85
    %v150 = vunpack.c.l.b16 %v86
    %v151 = vunpack.c.l.b16 %v87
    %v152 = vunpack.c.l.b16 %v88
    %v153 = vunpack.c.l.b16 %v89
    %v154 = vunpack.c.l.b16 %v90
    %v155 = vpack.c.b16 %v140, %v139
    %v156 = vpack.c.b16 %v142, %v141
    %v157 = vpack.c.b16 %v144, %v143
    %v158 = vpack.c.b16 %v146, %v145
    %v159 = vpack.c.b16 %v148, %v147
    %v160 = vpack.c.b16 %v150, %v149
    %v161 = vpack.c.b16 %v152, %v151
    %v162 = vpack.c.b16 %v154, %v153
    %v203 = vunpack.c.l.b16 %v91
    %v204 = vunpack.c.h.b16 %v91
    %v205 = vunpack.c.l.b16 %v92
    %v206 = vunpack.c.h.b16 %v92
    %v207 = vunpack.c.l.b16 %v93
    %v208 = vunpack.c.h.b16 %v93
    %v209 = vunpack.c.l.b16 %v94
    %v210 = vunpack.c.h.b16 %v94
    %v211 = vunpack.c.l.b16 %v95
    %v212 = vunpack.c.h.b16 %v95
    %v213 = vunpack.c.l.b16 %v96
    %v214 = vunpack.c.h.b16 %v96
    %v215 = vunpack.c.l.b16 %v97
    %v216 = vunpack.c.h.b16 %v97
    %v217 = vunpack.c.l.b16 %v98
    %v218 = vunpack.c.h.b16 %v98
    %v219 = vunpack.c.l.b16 %v99
    %v220 = vunpack.c.h.b16 %v99
    %v221 = vunpack.c.l.b16 %v100
    %v222 = vunpack.c.h.b16 %v100
    %v223 = vunpack.c.l.b16 %v101
    %v224 = vunpack.c.h.b16 %v101
    %v225 = vunpack.c.l.b16 %v102
    %v226 = vunpack.c.h.b16 %v102
    %v227 = vunpack.c.l.b16 %v103
    %v228 = vunpack.c.h.b16 %v103
    %v229 = vunpack.c.l.b16 %v104
    %v230 = vunpack.c.h.b16 %v104
    %v231 = vunpack.c.l.b16 %v105
    %v232 = vunpack.c.h.b16 %v105
    %v233 = vunpack.c.l.b16 %v106
    %v234 = vunpack.c.h.b16 %v106
    %v235 = vunpack.c.l.b16 %v107
    %v236 = vunpack.c.h.b16 %v107
    %v237 = vunpack.c.l.b16 %v108
    %v238 = vunpack.c.h.b16 %v108
    %v239 = vunpack.c.l.b16 %v109
    %v240 = vunpack.c.h.b16 %v109
    %v241 = vunpack.c.l.b16 %v110
    %v242 = vunpack.c.h.b16 %v110
    %v243 = vunpack.c.l.b16 %v111
    %v244 = vunpack.c.h.b16 %v111
    %v245 = vunpack.c.l.b16 %v112
    %v246 = vunpack.c.h.b16 %v112
    %v247 = vunpack.c.l.b16 %v113
    %v248 = vunpack.c.h.b16 %v113
    %v249 = vunpack.c.l.b16 %v114
    %v250 = vunpack.c.h.b16 %v114
    %v251 = vunpack.c.l.b16 %v115
    %v252 = vunpack.c.h.b16 %v115
    %v253 = vunpack.c.l.b16 %v116
    %v254 = vunpack.c.h.b16 %v116
    %v255 = vunpack.c.l.b16 %v117
    %v256 = vunpack.c.h.b16 %v117
    %v257 = vunpack.c.l.b16 %v118
    %v258 = vunpack.c.h.b16 %v118
    %v259 = vunpack.c.l.b16 %v119
    %v260 = vunpack.c.h.b16 %v119
    %v261 = vunpack.c.l.b16 %v120
    %v262 = vunpack.c.h.b16 %v120
    %v263 = vunpack.c.l.b16 %v121
    %v264 = vunpack.c.h.b16 %v121
    %v265 = vunpack.c.l.b16 %v122
    %v266 = vunpack.c.h.b16 %v122
    %v267 = vpack.c.b16 %v207, %v203
    %v268 = vpack.c.b16 %v208, %v204
    %v269 = vpack.c.b16 %v209, %v205
    %v270 = vpack.c.b16 %v210, %v206
    %v271 = vpack.c.b16 %v215, %v211
    %v272 = vpack.c.b16 %v216, %v212
    %v273 = vpack.c.b16 %v217, %v213
    %v274 = vpack.c.b16 %v218, %v214
    %v275 = vpack.c.b16 %v223, %v219
    %v276 = vpack.c.b16 %v224, %v220
    %v277 = vpack.c.b16 %v225, %v221
    %v278 = vpack.c.b16 %v226, %v222
    %v279 = vpack.c.b16 %v231, %v227
    %v280 = vpack.c.b16 %v232, %v228
    %v281 = vpack.c.b16 %v233, %v229
    %v282 = vpack.c.b16 %v234, %v230
    %v283 = vpack.c.b16 %v239, %v235
    %v284 = vpack.c.b16 %v240, %v236
    %v285 = vpack.c.b16 %v241, %v237
    %v286 = vpack.c.b16 %v242, %v238
    %v287 = vpack.c.b16 %v247, %v243
    %v288 = vpack.c.b16 %v248, %v244
    %v289 = vpack.c.b16 %v249, %v245
    %v290 = vpack.c.b16 %v250, %v246
    %v291 = vpack.c.b16 %v255, %v251
    %v292 = vpack.c.b16 %v256, %v252
    %v293 = vpack.c.b16 %v257, %v253
    %v294 = vpack.c.b16 %v258, %v254
    %v295 = vpack.c.b16 %v263, %v259
    %v296 = vpack.c.b16 %v264, %v260
    %v297 = vpack.c.b16 %v265, %v261
    %v298 = vpack.c.b16 %v266, %v262
    %331 = vmatprep.subr.bf16.mxu0 %v296
    %332 = vmatpush1.bf16.msra.mxu0 %v295
    %333 = vmatprep.subr.bf16.mxu0 %v292
    %334 = vmatpush1.bf16.msra.mxu0 %v291
    %335 = vmatprep.subr.bf16.mxu0 %v288
    %336 = vmatpush1.bf16.msra.mxu0 %v287
    %337 = vmatprep.subr.bf16.mxu0 %v284
    %338 = vmatpush1.bf16.msra.mxu0 %v283
    %339 = vmatprep.subr.bf16.mxu0 %v280
    %340 = vmatpush1.bf16.msra.mxu0 %v279
    %341 = vmatprep.subr.bf16.mxu0 %v276
    %342 = vmatpush1.bf16.msra.mxu0 %v275
    %343 = vmatprep.subr.bf16.mxu0 %v272
    %344 = vmatpush1.bf16.msra.mxu0 %v271
    %345 = vmatprep.subr.bf16.mxu0 %v268
    %346 = vmatpush1.bf16.msra.mxu0 %v267
    %347 = vmatprep.subr.bf16.mxu0 0
    %348 = vmatpush2.bf16.msra.mxu0 0
    %349 = vmatprep.subr.bf16.mxu0 0
    %350 = vmatpush2.bf16.msra.mxu0 0
    %351 = vmatprep.subr.bf16.mxu0 0
    %352 = vmatpush2.bf16.msra.mxu0 0
    %353 = vmatprep.subr.bf16.mxu0 0
    %354 = vmatpush2.bf16.msra.mxu0 0
    %355 = vmatprep.subr.bf16.mxu0 0
    %356 = vmatpush2.bf16.msra.mxu0 0
    %357 = vmatprep.subr.bf16.mxu0 0
    %358 = vmatpush2.bf16.msra.mxu0 0
    %359 = vmatprep.subr.bf16.mxu0 0
    %360 = vmatpush2.bf16.msra.mxu0 0
    %361 = vmatprep.subr.bf16.mxu0 0
    %362 = vmatpush2.bf16.msra.mxu0 0
    %363 = vmatprep.mubr.bf16.mxu0 0
    %364 = vmatmul.mubr.bf16.gmra.mxu0 %v155
    %v365 = vpop.f32.mrf.mxu0
    %v366 = vadd.f32 0.0, %v365
    %v367 = vpop.f32.mrf.mxu0
    %v368 = vadd.f32 0.0, %v367
    %v369 = vpop.f32.mrf.mxu0
    %v370 = vadd.f32 0.0, %v369
    %v371 = vpop.f32.mrf.mxu0
    %v372 = vadd.f32 0.0, %v371
    %373 = vmatprep.mubr.bf16.mxu0 0
    %374 = vmatmul.mubr.bf16.gmra.mxu0 %v156
    %v375 = vpop.f32.mrf.mxu0
    %v376 = vadd.f32 0.0, %v375
    %v377 = vpop.f32.mrf.mxu0
    %v378 = vadd.f32 0.0, %v377
    %v379 = vpop.f32.mrf.mxu0
    %v380 = vadd.f32 0.0, %v379
    %v381 = vpop.f32.mrf.mxu0
    %v382 = vadd.f32 0.0, %v381
    %383 = vmatprep.mubr.bf16.mxu0 0
    %384 = vmatmul.mubr.bf16.gmra.mxu0 %v157
    %v385 = vpop.f32.mrf.mxu0
    %v386 = vadd.f32 0.0, %v385
    %v387 = vpop.f32.mrf.mxu0
    %v388 = vadd.f32 0.0, %v387
    %v389 = vpop.f32.mrf.mxu0
    %v390 = vadd.f32 0.0, %v389
    %v391 = vpop.f32.mrf.mxu0
    %v392 = vadd.f32 0.0, %v391
    %393 = vmatprep.mubr.bf16.mxu0 0
    %394 = vmatmul.mubr.bf16.gmra.mxu0 %v158
    %v395 = vpop.f32.mrf.mxu0
    %v396 = vadd.f32 0.0, %v395
    %v397 = vpop.f32.mrf.mxu0
    %v398 = vadd.f32 0.0, %v397
    %v399 = vpop.f32.mrf.mxu0
    %v400 = vadd.f32 0.0, %v399
    %v401 = vpop.f32.mrf.mxu0
    %v402 = vadd.f32 0.0, %v401
    %403 = vmatprep.mubr.bf16.mxu0 0
    %404 = vmatmul.mubr.bf16.gmra.mxu0 %v159
    %v405 = vpop.f32.mrf.mxu0
    %v406 = vadd.f32 0.0, %v405
    %v407 = vpop.f32.mrf.mxu0
    %v408 = vadd.f32 0.0, %v407
    %v409 = vpop.f32.mrf.mxu0
    %v410 = vadd.f32 0.0, %v409
    %v411 = vpop.f32.mrf.mxu0
    %v412 = vadd.f32 0.0, %v411
    %413 = vmatprep.mubr.bf16.mxu0 0
    %414 = vmatmul.mubr.bf16.gmra.mxu0 %v160
    %v415 = vpop.f32.mrf.mxu0
    %v416 = vadd.f32 0.0, %v415
    %v417 = vpop.f32.mrf.mxu0
    %v418 = vadd.f32 0.0, %v417
    %v419 = vpop.f32.mrf.mxu0
    %v420 = vadd.f32 0.0, %v419
    %v421 = vpop.f32.mrf.mxu0
    %v422 = vadd.f32 0.0, %v421
    %423 = vmatprep.mubr.bf16.mxu0 0
    %424 = vmatmul.mubr.bf16.gmra.mxu0 %v161
    %v425 = vpop.f32.mrf.mxu0
    %v426 = vadd.f32 0.0, %v425
    %v427 = vpop.f32.mrf.mxu0
    %v428 = vadd.f32 0.0, %v427
    %v429 = vpop.f32.mrf.mxu0
    %v430 = vadd.f32 0.0, %v429
    %v431 = vpop.f32.mrf.mxu0
    %v432 = vadd.f32 0.0, %v431
    %433 = vmatprep.mubr.bf16.mxu0 0
    %434 = vmatmul.mubr.bf16.gmra.mxu0 %v162
    %v435 = vpop.f32.mrf.mxu0
    %v436 = vadd.f32 0.0, %v435
    %v437 = vpop.f32.mrf.mxu0
    %v438 = vadd.f32 0.0, %v437
    %v439 = vpop.f32.mrf.mxu0
    %v440 = vadd.f32 0.0, %v439
    %v441 = vpop.f32.mrf.mxu0
    %v442 = vadd.f32 0.0, %v441
    %443 = vdwg.mxu0
    %444 = vmatprep.subr.bf16.mxu0 %v298
    %445 = vmatpush1.bf16.msra.mxu0 %v297
    %446 = vmatprep.subr.bf16.mxu0 %v294
    %447 = vmatpush1.bf16.msra.mxu0 %v293
    %448 = vmatprep.subr.bf16.mxu0 %v290
    %449 = vmatpush1.bf16.msra.mxu0 %v289
    %450 = vmatprep.subr.bf16.mxu0 %v286
    %451 = vmatpush1.bf16.msra.mxu0 %v285
    %452 = vmatprep.subr.bf16.mxu0 %v282
    %453 = vmatpush1.bf16.msra.mxu0 %v281
    %454 = vmatprep.subr.bf16.mxu0 %v278
    %455 = vmatpush1.bf16.msra.mxu0 %v277
    %456 = vmatprep.subr.bf16.mxu0 %v274
    %457 = vmatpush1.bf16.msra.mxu0 %v273
    %458 = vmatprep.subr.bf16.mxu0 %v270
    %459 = vmatpush1.bf16.msra.mxu0 %v269
    %460 = vmatprep.subr.bf16.mxu0 0
    %461 = vmatpush2.bf16.msra.mxu0 0
    %462 = vmatprep.subr.bf16.mxu0 0
    %463 = vmatpush2.bf16.msra.mxu0 0
    %464 = vmatprep.subr.bf16.mxu0 0
    %465 = vmatpush2.bf16.msra.mxu0 0
    %466 = vmatprep.subr.bf16.mxu0 0
    %467 = vmatpush2.bf16.msra.mxu0 0
    %468 = vmatprep.subr.bf16.mxu0 0
    %469 = vmatpush2.bf16.msra.mxu0 0
    %470 = vmatprep.subr.bf16.mxu0 0
    %471 = vmatpush2.bf16.msra.mxu0 0
    %472 = vmatprep.subr.bf16.mxu0 0
    %473 = vmatpush2.bf16.msra.mxu0 0
    %474 = vmatprep.subr.bf16.mxu0 0
    %475 = vmatpush2.bf16.msra.mxu0 0
    %476 = vmatprep.mubr.bf16.mxu0 0
    %477 = vmatmul.mubr.bf16.gmra.mxu0 %v155
    %v478 = vpop.f32.mrf.mxu0
    %v479 = vadd.f32 0.0, %v478
    %v480 = vpop.f32.mrf.mxu0
    %v481 = vadd.f32 0.0, %v480
    %v482 = vpop.f32.mrf.mxu0
    %v483 = vadd.f32 0.0, %v482
    %v484 = vpop.f32.mrf.mxu0
    %v485 = vadd.f32 0.0, %v484
    %486 = vmatprep.mubr.bf16.mxu0 0
    %487 = vmatmul.mubr.bf16.gmra.mxu0 %v156
    %v488 = vpop.f32.mrf.mxu0
    %v489 = vadd.f32 0.0, %v488
    %v490 = vpop.f32.mrf.mxu0
    %v491 = vadd.f32 0.0, %v490
    %v492 = vpop.f32.mrf.mxu0
    %v493 = vadd.f32 0.0, %v492
    %v494 = vpop.f32.mrf.mxu0
    %v495 = vadd.f32 0.0, %v494
    %496 = vmatprep.mubr.bf16.mxu0 0
    %497 = vmatmul.mubr.bf16.gmra.mxu0 %v157
    %v498 = vpop.f32.mrf.mxu0
    %v499 = vadd.f32 0.0, %v498
    %v500 = vpop.f32.mrf.mxu0
    %v501 = vadd.f32 0.0, %v500
    %v502 = vpop.f32.mrf.mxu0
    %v503 = vadd.f32 0.0, %v502
    %v504 = vpop.f32.mrf.mxu0
    %v505 = vadd.f32 0.0, %v504
    %506 = vmatprep.mubr.bf16.mxu0 0
    %507 = vmatmul.mubr.bf16.gmra.mxu0 %v158
    %v508 = vpop.f32.mrf.mxu0
    %v509 = vadd.f32 0.0, %v508
    %v510 = vpop.f32.mrf.mxu0
    %v511 = vadd.f32 0.0, %v510
    %v512 = vpop.f32.mrf.mxu0
    %v513 = vadd.f32 0.0, %v512
    %v514 = vpop.f32.mrf.mxu0
    %v515 = vadd.f32 0.0, %v514
    %516 = vmatprep.mubr.bf16.mxu0 0
    %517 = vmatmul.mubr.bf16.gmra.mxu0 %v159
    %v518 = vpop.f32.mrf.mxu0
    %v519 = vadd.f32 0.0, %v518
    %v520 = vpop.f32.mrf.mxu0
    %v521 = vadd.f32 0.0, %v520
    %v522 = vpop.f32.mrf.mxu0
    %v523 = vadd.f32 0.0, %v522
    %v524 = vpop.f32.mrf.mxu0
    %v525 = vadd.f32 0.0, %v524
    %526 = vmatprep.mubr.bf16.mxu0 0
    %527 = vmatmul.mubr.bf16.gmra.mxu0 %v160
    %v528 = vpop.f32.mrf.mxu0
    %v529 = vadd.f32 0.0, %v528
    %v530 = vpop.f32.mrf.mxu0
    %v531 = vadd.f32 0.0, %v530
    %v532 = vpop.f32.mrf.mxu0
    %v533 = vadd.f32 0.0, %v532
    %v534 = vpop.f32.mrf.mxu0
    %v535 = vadd.f32 0.0, %v534
    %536 = vmatprep.mubr.bf16.mxu0 0
    %537 = vmatmul.mubr.bf16.gmra.mxu0 %v161
    %v538 = vpop.f32.mrf.mxu0
    %v539 = vadd.f32 0.0, %v538
    %v540 = vpop.f32.mrf.mxu0
    %v541 = vadd.f32 0.0, %v540
    %v542 = vpop.f32.mrf.mxu0
    %v543 = vadd.f32 0.0, %v542
    %v544 = vpop.f32.mrf.mxu0
    %v545 = vadd.f32 0.0, %v544
    %546 = vmatprep.mubr.bf16.mxu0 0
    %547 = vmatmul.mubr.bf16.gmra.mxu0 %v162
    %v548 = vpop.f32.mrf.mxu0
    %v549 = vadd.f32 0.0, %v548
    %v550 = vpop.f32.mrf.mxu0
    %v551 = vadd.f32 0.0, %v550
    %v552 = vpop.f32.mrf.mxu0
    %v553 = vadd.f32 0.0, %v552
    %v554 = vpop.f32.mrf.mxu0
    %v555 = vadd.f32 0.0, %v554
    %556 = vdwg.mxu0
    %v557 = vpack.c.bf16 %v370, %v366
    %v558 = vpack.c.bf16 %v372, %v368
    %v559 = vpack.c.bf16 %v483, %v479
    %v560 = vpack.c.bf16 %v485, %v481
    %v561 = vpack.c.bf16 %v380, %v376
    %v562 = vpack.c.bf16 %v382, %v378
    %v563 = vpack.c.bf16 %v493, %v489
    %v564 = vpack.c.bf16 %v495, %v491
    %v565 = vpack.c.bf16 %v390, %v386
    %v566 = vpack.c.bf16 %v392, %v388
    %v567 = vpack.c.bf16 %v503, %v499
    %v568 = vpack.c.bf16 %v505, %v501
    %v569 = vpack.c.bf16 %v400, %v396
    %v570 = vpack.c.bf16 %v402, %v398
    %v571 = vpack.c.bf16 %v513, %v509
    %v572 = vpack.c.bf16 %v515, %v511
    %v573 = vpack.c.bf16 %v410, %v406
    %v574 = vpack.c.bf16 %v412, %v408
    %v575 = vpack.c.bf16 %v523, %v519
    %v576 = vpack.c.bf16 %v525, %v521
    %v577 = vpack.c.bf16 %v420, %v416
    %v578 = vpack.c.bf16 %v422, %v418
    %v579 = vpack.c.bf16 %v533, %v529
    %v580 = vpack.c.bf16 %v535, %v531
    %v581 = vpack.c.bf16 %v430, %v426
    %v582 = vpack.c.bf16 %v432, %v428
    %v583 = vpack.c.bf16 %v543, %v539
    %v584 = vpack.c.bf16 %v545, %v541
    %v585 = vpack.c.bf16 %v440, %v436
    %v586 = vpack.c.bf16 %v442, %v438
    %v587 = vpack.c.bf16 %v553, %v549
    %v588 = vpack.c.bf16 %v555, %v551
    %v589 = vld [vmem:[#allocation7] sm:$0xf]
    %v592 = vunpack.c.l.s4 1966171168
    %v593 = vunpack.c.0.s8 %v592
    %v594 = vlaneseq
    %v595 = vshrl.u32 %v594, 7
    %v596 = vsub.s32 %v593, %v595
    %v597 = vrot.slane %v589, %v596
    %v598 = vcombine.high %v597, %v597
    %v600 = vunpack.c.l.s4 1966171168
    %v601 = vunpack.c.0.s8 %v600
    %v602 = vlaneseq
    %v603 = vshrl.u32 %v602, 7
    %v604 = vsub.s32 %v601, %v603
    %v605 = vrot.slane %v597, %v604
    %v607 = vunpack.c.l.s4 1966171168
    %v608 = vunpack.c.0.s8 %v607
    %v609 = vlaneseq
    %v610 = vshrl.u32 %v609, 7
    %v611 = vsub.s32 %v608, %v610
    %v612 = vrot.slane %v598, %v611
    %v613 = vcombine.high %v605, %v605
    %v614 = vcombine.high %v612, %v612
    %v616 = vpack.i.b16 %v605, %v605
    %v618 = vlaneseq
    %v619 = vshrl.u32 %v618, 7
    %v620 = vsub.s32 0, %v619
    %v621 = vrot.slane %v616, %v620
    %v623 = vpack.i.b16 %v612, %v612
    %v625 = vlaneseq
    %v626 = vshrl.u32 %v625, 7
    %v627 = vsub.s32 0, %v626
    %v628 = vrot.slane %v623, %v627
    %v630 = vpack.i.b16 %v613, %v613
    %v632 = vlaneseq
    %v633 = vshrl.u32 %v632, 7
    %v634 = vsub.s32 0, %v633
    %v635 = vrot.slane %v630, %v634
    %v637 = vpack.i.b16 %v614, %v614
    %v639 = vlaneseq
    %v640 = vshrl.u32 %v639, 7
    %v641 = vsub.s32 0, %v640
    %v642 = vrot.slane %v637, %v641
    %v643 = vadd.bf16 %v557, %v621
    %v644 = vadd.bf16 %v558, %v628
    %v645 = vadd.bf16 %v559, %v635
    %v646 = vadd.bf16 %v560, %v642
    %v647 = vadd.bf16 %v561, %v621
    %v648 = vadd.bf16 %v562, %v628
    %v649 = vadd.bf16 %v563, %v635
    %v650 = vadd.bf16 %v564, %v642
    %v651 = vadd.bf16 %v565, %v621
    %v652 = vadd.bf16 %v566, %v628
    %v653 = vadd.bf16 %v567, %v635
    %v654 = vadd.bf16 %v568, %v642
    %v655 = vadd.bf16 %v569, %v621
    %v656 = vadd.bf16 %v570, %v628
    %v657 = vadd.bf16 %v571, %v635
    %v658 = vadd.bf16 %v572, %v642
    %v659 = vadd.bf16 %v573, %v621
    %v660 = vadd.bf16 %v574, %v628
    %v661 = vadd.bf16 %v575, %v635
    %v662 = vadd.bf16 %v576, %v642
    %v663 = vadd.bf16 %v577, %v621
    %v664 = vadd.bf16 %v578, %v628
    %v665 = vadd.bf16 %v579, %v635
    %v666 = vadd.bf16 %v580, %v642
    %v667 = vadd.bf16 %v581, %v621
    %v668 = vadd.bf16 %v582, %v628
    %v669 = vadd.bf16 %v583, %v635
    %v670 = vadd.bf16 %v584, %v642
    %v671 = vadd.bf16 %v585, %v621
    %v672 = vadd.bf16 %v586, %v628
    %v673 = vadd.bf16 %v587, %v635
    %v674 = vadd.bf16 %v588, %v642
    %v675 = vmax.bf16 %v643, 0
    %v676 = vmax.bf16 %v644, 0
    %v677 = vmax.bf16 %v645, 0
    %v678 = vmax.bf16 %v646, 0
    %v679 = vmax.bf16 %v647, 0
    %v680 = vmax.bf16 %v648, 0
    %v681 = vmax.bf16 %v649, 0
    %v682 = vmax.bf16 %v650, 0
    %v683 = vmax.bf16 %v651, 0
    %v684 = vmax.bf16 %v652, 0
    %v685 = vmax.bf16 %v653, 0
    %v686 = vmax.bf16 %v654, 0
    %v687 = vmax.bf16 %v655, 0
    %v688 = vmax.bf16 %v656, 0
    %v689 = vmax.bf16 %v657, 0
    %v690 = vmax.bf16 %v658, 0
    %v691 = vmax.bf16 %v659, 0
    %v692 = vmax.bf16 %v660, 0
    %v693 = vmax.bf16 %v661, 0
    %v694 = vmax.bf16 %v662, 0
    %v695 = vmax.bf16 %v663, 0
    %v696 = vmax.bf16 %v664, 0
    %v697 = vmax.bf16 %v665, 0
    %v698 = vmax.bf16 %v666, 0
    %v699 = vmax.bf16 %v667, 0
    %v700 = vmax.bf16 %v668, 0
    %v701 = vmax.bf16 %v669, 0
    %v702 = vmax.bf16 %v670, 0
    %v703 = vmax.bf16 %v671, 0
    %v704 = vmax.bf16 %v672, 0
    %v705 = vmax.bf16 %v673, 0
    %v706 = vmax.bf16 %v674, 0
    %v707 = vld [vmem:[#allocation8] sm:$0xf]
    %v708 = vld [vmem:[#allocation8 + $0x4] sm:$0xf]
    %v709 = vld [vmem:[#allocation8 + $0x8] sm:$0xf]
    %v710 = vld [vmem:[#allocation8 + $0xc] sm:$0xf]
    %v711 = vld [vmem:[#allocation8 + $0x10] sm:$0xf]
    %v712 = vld [vmem:[#allocation8 + $0x14] sm:$0xf]
    %v713 = vld [vmem:[#allocation8 + $0x18] sm:$0xf]
    %v714 = vld [vmem:[#allocation8 + $0x1c] sm:$0xf]
    %v715 = vld [vmem:[#allocation8 + $0x20] sm:$0xf]
    %v716 = vld [vmem:[#allocation8 + $0x24] sm:$0xf]
    %v717 = vld [vmem:[#allocation8 + $0x28] sm:$0xf]
    %v718 = vld [vmem:[#allocation8 + $0x2c] sm:$0xf]
    %v719 = vld [vmem:[#allocation8 + $0x30] sm:$0xf]
    %v720 = vld [vmem:[#allocation8 + $0x34] sm:$0xf]
    %v721 = vld [vmem:[#allocation8 + $0x38] sm:$0xf]
    %v722 = vld [vmem:[#allocation8 + $0x3c] sm:$0xf]
    %v723 = vld [vmem:[#allocation8 + $0x40] sm:$0xf]
    %v724 = vld [vmem:[#allocation8 + $0x44] sm:$0xf]
    %v725 = vld [vmem:[#allocation8 + $0x48] sm:$0xf]
    %v726 = vld [vmem:[#allocation8 + $0x4c] sm:$0xf]
    %v727 = vld [vmem:[#allocation8 + $0x50] sm:$0xf]
    %v728 = vld [vmem:[#allocation8 + $0x54] sm:$0xf]
    %v729 = vld [vmem:[#allocation8 + $0x58] sm:$0xf]
    %v730 = vld [vmem:[#allocation8 + $0x5c] sm:$0xf]
    %v731 = vld [vmem:[#allocation8 + $0x60] sm:$0xf]
    %v732 = vld [vmem:[#allocation8 + $0x64] sm:$0xf]
    %v733 = vld [vmem:[#allocation8 + $0x68] sm:$0xf]
    %v734 = vld [vmem:[#allocation8 + $0x6c] sm:$0xf]
    %v735 = vld [vmem:[#allocation8 + $0x70] sm:$0xf]
    %v736 = vld [vmem:[#allocation8 + $0x74] sm:$0xf]
    %v737 = vld [vmem:[#allocation8 + $0x78] sm:$0xf]
    %v738 = vld [vmem:[#allocation8 + $0x7c] sm:$0xf]
    %v739 = vld [vmem:[#allocation8 + $0x80] sm:$0xf]
    %v740 = vld [vmem:[#allocation8 + $0x84] sm:$0xf]
    %v741 = vld [vmem:[#allocation8 + $0x88] sm:$0xf]
    %v742 = vld [vmem:[#allocation8 + $0x8c] sm:$0xf]
    %v743 = vld [vmem:[#allocation8 + $0x90] sm:$0xf]
    %v744 = vld [vmem:[#allocation8 + $0x94] sm:$0xf]
    %v745 = vld [vmem:[#allocation8 + $0x98] sm:$0xf]
    %v746 = vld [vmem:[#allocation8 + $0x9c] sm:$0xf]
    %v747 = vld [vmem:[#allocation8 + $0xa0] sm:$0xf]
    %v748 = vld [vmem:[#allocation8 + $0xa4] sm:$0xf]
    %v749 = vld [vmem:[#allocation8 + $0xa8] sm:$0xf]
    %v750 = vld [vmem:[#allocation8 + $0xac] sm:$0xf]
    %v751 = vld [vmem:[#allocation8 + $0xb0] sm:$0xf]
    %v752 = vld [vmem:[#allocation8 + $0xb4] sm:$0xf]
    %v753 = vld [vmem:[#allocation8 + $0xb8] sm:$0xf]
    %v754 = vld [vmem:[#allocation8 + $0xbc] sm:$0xf]
    %v755 = vld [vmem:[#allocation8 + $0xc0] sm:$0xf]
    %v756 = vld [vmem:[#allocation8 + $0xc4] sm:$0xf]
    %v757 = vld [vmem:[#allocation8 + $0xc8] sm:$0xf]
    %v758 = vld [vmem:[#allocation8 + $0xcc] sm:$0xf]
    %v759 = vld [vmem:[#allocation8 + $0xd0] sm:$0xf]
    %v760 = vld [vmem:[#allocation8 + $0xd4] sm:$0xf]
    %v761 = vld [vmem:[#allocation8 + $0xd8] sm:$0xf]
    %v762 = vld [vmem:[#allocation8 + $0xdc] sm:$0xf]
    %v763 = vld [vmem:[#allocation8 + $0xe0] sm:$0xf]
    %v764 = vld [vmem:[#allocation8 + $0xe4] sm:$0xf]
    %v765 = vld [vmem:[#allocation8 + $0xe8] sm:$0xf]
    %v766 = vld [vmem:[#allocation8 + $0xec] sm:$0xf]
    %v767 = vld [vmem:[#allocation8 + $0xf0] sm:$0xf]
    %v768 = vld [vmem:[#allocation8 + $0xf4] sm:$0xf]
    %v769 = vld [vmem:[#allocation8 + $0xf8] sm:$0xf]
    %v770 = vld [vmem:[#allocation8 + $0xfc] sm:$0xf]
    %v771 = vld [vmem:[%s4] sm:$0x1]
    %v772 = vunpack.c.l.bf16 %v771
    %v773 = vlaneseq
    %v774 = vshrl.u32 %v773, 7
    %v775 = vsub.s32 0, %v774
    %v776 = vrot.slane %v772, %v775
    %v841 = vunpack.c.l.b16 %v707
    %v842 = vunpack.c.l.b16 %v708
    %v843 = vunpack.c.l.b16 %v709
    %v844 = vunpack.c.l.b16 %v710
    %v845 = vunpack.c.l.b16 %v711
    %v846 = vunpack.c.l.b16 %v712
    %v847 = vunpack.c.l.b16 %v713
    %v848 = vunpack.c.l.b16 %v714
    %v849 = vunpack.c.l.b16 %v715
    %v850 = vunpack.c.l.b16 %v716
    %v851 = vunpack.c.l.b16 %v717
    %v852 = vunpack.c.l.b16 %v718
    %v853 = vunpack.c.l.b16 %v719
    %v854 = vunpack.c.l.b16 %v720
    %v855 = vunpack.c.l.b16 %v721
    %v856 = vunpack.c.l.b16 %v722
    %v857 = vunpack.c.l.b16 %v723
    %v858 = vunpack.c.l.b16 %v724
    %v859 = vunpack.c.l.b16 %v725
    %v860 = vunpack.c.l.b16 %v726
    %v861 = vunpack.c.l.b16 %v727
    %v862 = vunpack.c.l.b16 %v728
    %v863 = vunpack.c.l.b16 %v729
    %v864 = vunpack.c.l.b16 %v730
    %v865 = vunpack.c.l.b16 %v731
    %v866 = vunpack.c.l.b16 %v732
    %v867 = vunpack.c.l.b16 %v733
    %v868 = vunpack.c.l.b16 %v734
    %v869 = vunpack.c.l.b16 %v735
    %v870 = vunpack.c.l.b16 %v736
    %v871 = vunpack.c.l.b16 %v737
    %v872 = vunpack.c.l.b16 %v738
    %v873 = vunpack.c.l.b16 %v739
    %v874 = vunpack.c.l.b16 %v740
    %v875 = vunpack.c.l.b16 %v741
    %v876 = vunpack.c.l.b16 %v742
    %v877 = vunpack.c.l.b16 %v743
    %v878 = vunpack.c.l.b16 %v744
    %v879 = vunpack.c.l.b16 %v745
    %v880 = vunpack.c.l.b16 %v746
    %v881 = vunpack.c.l.b16 %v747
    %v882 = vunpack.c.l.b16 %v748
    %v883 = vunpack.c.l.b16 %v749
    %v884 = vunpack.c.l.b16 %v750
    %v885 = vunpack.c.l.b16 %v751
    %v886 = vunpack.c.l.b16 %v752
    %v887 = vunpack.c.l.b16 %v753
    %v888 = vunpack.c.l.b16 %v754
    %v889 = vunpack.c.l.b16 %v755
    %v890 = vunpack.c.l.b16 %v756
    %v891 = vunpack.c.l.b16 %v757
    %v892 = vunpack.c.l.b16 %v758
    %v893 = vunpack.c.l.b16 %v759
    %v894 = vunpack.c.l.b16 %v760
    %v895 = vunpack.c.l.b16 %v761
    %v896 = vunpack.c.l.b16 %v762
    %v897 = vunpack.c.l.b16 %v763
    %v898 = vunpack.c.l.b16 %v764
    %v899 = vunpack.c.l.b16 %v765
    %v900 = vunpack.c.l.b16 %v766
    %v901 = vunpack.c.l.b16 %v767
    %v902 = vunpack.c.l.b16 %v768
    %v903 = vunpack.c.l.b16 %v769
    %v904 = vunpack.c.l.b16 %v770
    %v905 = vpack.c.b16 %v842, %v841
    %v906 = vpack.c.b16 %v844, %v843
    %v907 = vpack.c.b16 %v846, %v845
    %v908 = vpack.c.b16 %v848, %v847
    %v909 = vpack.c.b16 %v850, %v849
    %v910 = vpack.c.b16 %v852, %v851
    %v911 = vpack.c.b16 %v854, %v853
    %v912 = vpack.c.b16 %v856, %v855
    %v913 = vpack.c.b16 %v858, %v857
    %v914 = vpack.c.b16 %v860, %v859
    %v915 = vpack.c.b16 %v862, %v861
    %v916 = vpack.c.b16 %v864, %v863
    %v917 = vpack.c.b16 %v866, %v865
    %v918 = vpack.c.b16 %v868, %v867
    %v919 = vpack.c.b16 %v870, %v869
    %v920 = vpack.c.b16 %v872, %v871
    %v921 = vpack.c.b16 %v874, %v873
    %v922 = vpack.c.b16 %v876, %v875
    %v923 = vpack.c.b16 %v878, %v877
    %v924 = vpack.c.b16 %v880, %v879
    %v925 = vpack.c.b16 %v882, %v881
    %v926 = vpack.c.b16 %v884, %v883
    %v927 = vpack.c.b16 %v886, %v885
    %v928 = vpack.c.b16 %v888, %v887
    %v929 = vpack.c.b16 %v890, %v889
    %v930 = vpack.c.b16 %v892, %v891
    %v931 = vpack.c.b16 %v894, %v893
    %v932 = vpack.c.b16 %v896, %v895
    %v933 = vpack.c.b16 %v898, %v897
    %v934 = vpack.c.b16 %v900, %v899
    %v935 = vpack.c.b16 %v902, %v901
    %v936 = vpack.c.b16 %v904, %v903
    %969 = vmatprep.subr.bf16.mxu0 0
    %970 = vmatpush1.bf16.msra.mxu0 %v912
    %971 = vmatprep.subr.bf16.mxu0 0
    %972 = vmatpush1.bf16.msra.mxu0 %v911
    %973 = vmatprep.subr.bf16.mxu0 0
    %974 = vmatpush1.bf16.msra.mxu0 %v910
    %975 = vmatprep.subr.bf16.mxu0 0
    %976 = vmatpush1.bf16.msra.mxu0 %v909
    %977 = vmatprep.subr.bf16.mxu0 0
    %978 = vmatpush1.bf16.msra.mxu0 %v908
    %979 = vmatprep.subr.bf16.mxu0 0
    %980 = vmatpush1.bf16.msra.mxu0 %v907
    %981 = vmatprep.subr.bf16.mxu0 0
    %982 = vmatpush1.bf16.msra.mxu0 %v906
    %983 = vmatprep.subr.bf16.mxu0 0
    %984 = vmatpush1.bf16.msra.mxu0 %v905
    %985 = vmatprep.subr.bf16.mxu0 0
    %986 = vmatpush2.bf16.msra.mxu0 %v920
    %987 = vmatprep.subr.bf16.mxu0 0
    %988 = vmatpush2.bf16.msra.mxu0 %v919
    %989 = vmatprep.subr.bf16.mxu0 0
    %990 = vmatpush2.bf16.msra.mxu0 %v918
    %991 = vmatprep.subr.bf16.mxu0 0
    %992 = vmatpush2.bf16.msra.mxu0 %v917
    %993 = vmatprep.subr.bf16.mxu0 0
    %994 = vmatpush2.bf16.msra.mxu0 %v916
    %995 = vmatprep.subr.bf16.mxu0 0
    %996 = vmatpush2.bf16.msra.mxu0 %v915
    %997 = vmatprep.subr.bf16.mxu0 0
    %998 = vmatpush2.bf16.msra.mxu0 %v914
    %999 = vmatprep.subr.bf16.mxu0 0
    %1000 = vmatpush2.bf16.msra.mxu0 %v913
    %1001 = vmatprep.mubr.bf16.mxu0 %v676
    %1002 = vmatmul.mubr.bf16.gmra.mxu0 %v675
    %v1003 = vpop.f32.mrf.mxu0
    %v1004 = vadd.f32 %v776, %v1003
    %v1005 = vpop.f32.mrf.mxu0
    %v1006 = vpop.f32.mrf.mxu0
    %v1007 = vadd.f32 %v776, %v1006
    %v1008 = vpop.f32.mrf.mxu0
    %1009 = vmatprep.mubr.bf16.mxu0 %v680
    %1010 = vmatmul.mubr.bf16.gmra.mxu0 %v679
    %v1011 = vpop.f32.mrf.mxu0
    %v1012 = vadd.f32 %v776, %v1011
    %v1013 = vpop.f32.mrf.mxu0
    %v1014 = vpop.f32.mrf.mxu0
    %v1015 = vadd.f32 %v776, %v1014
    %v1016 = vpop.f32.mrf.mxu0
    %1017 = vmatprep.mubr.bf16.mxu0 %v684
    %1018 = vmatmul.mubr.bf16.gmra.mxu0 %v683
    %v1019 = vpop.f32.mrf.mxu0
    %v1020 = vadd.f32 %v776, %v1019
    %v1021 = vpop.f32.mrf.mxu0
    %v1022 = vpop.f32.mrf.mxu0
    %v1023 = vadd.f32 %v776, %v1022
    %v1024 = vpop.f32.mrf.mxu0
    %1025 = vmatprep.mubr.bf16.mxu0 %v688
    %1026 = vmatmul.mubr.bf16.gmra.mxu0 %v687
    %v1027 = vpop.f32.mrf.mxu0
    %v1028 = vadd.f32 %v776, %v1027
    %v1029 = vpop.f32.mrf.mxu0
    %v1030 = vpop.f32.mrf.mxu0
    %v1031 = vadd.f32 %v776, %v1030
    %v1032 = vpop.f32.mrf.mxu0
    %1033 = vmatprep.mubr.bf16.mxu0 %v692
    %1034 = vmatmul.mubr.bf16.gmra.mxu0 %v691
    %v1035 = vpop.f32.mrf.mxu0
    %v1036 = vadd.f32 %v776, %v1035
    %v1037 = vpop.f32.mrf.mxu0
    %v1038 = vpop.f32.mrf.mxu0
    %v1039 = vadd.f32 %v776, %v1038
    %v1040 = vpop.f32.mrf.mxu0
    %1041 = vmatprep.mubr.bf16.mxu0 %v696
    %1042 = vmatmul.mubr.bf16.gmra.mxu0 %v695
    %v1043 = vpop.f32.mrf.mxu0
    %v1044 = vadd.f32 %v776, %v1043
    %v1045 = vpop.f32.mrf.mxu0
    %v1046 = vpop.f32.mrf.mxu0
    %v1047 = vadd.f32 %v776, %v1046
    %v1048 = vpop.f32.mrf.mxu0
    %1049 = vmatprep.mubr.bf16.mxu0 %v700
    %1050 = vmatmul.mubr.bf16.gmra.mxu0 %v699
    %v1051 = vpop.f32.mrf.mxu0
    %v1052 = vadd.f32 %v776, %v1051
    %v1053 = vpop.f32.mrf.mxu0
    %v1054 = vpop.f32.mrf.mxu0
    %v1055 = vadd.f32 %v776, %v1054
    %v1056 = vpop.f32.mrf.mxu0
    %1057 = vmatprep.mubr.bf16.mxu0 %v704
    %1058 = vmatmul.mubr.bf16.gmra.mxu0 %v703
    %v1059 = vpop.f32.mrf.mxu0
    %v1060 = vadd.f32 %v776, %v1059
    %v1061 = vpop.f32.mrf.mxu0
    %v1062 = vpop.f32.mrf.mxu0
    %v1063 = vadd.f32 %v776, %v1062
    %v1064 = vpop.f32.mrf.mxu0
    %1065 = vdwg.mxu0
    %1066 = vmatprep.subr.bf16.mxu0 0
    %1067 = vmatpush1.bf16.msra.mxu0 %v928
    %1068 = vmatprep.subr.bf16.mxu0 0
    %1069 = vmatpush1.bf16.msra.mxu0 %v927
    %1070 = vmatprep.subr.bf16.mxu0 0
    %1071 = vmatpush1.bf16.msra.mxu0 %v926
    %1072 = vmatprep.subr.bf16.mxu0 0
    %1073 = vmatpush1.bf16.msra.mxu0 %v925
    %1074 = vmatprep.subr.bf16.mxu0 0
    %1075 = vmatpush1.bf16.msra.mxu0 %v924
    %1076 = vmatprep.subr.bf16.mxu0 0
    %1077 = vmatpush1.bf16.msra.mxu0 %v923
    %1078 = vmatprep.subr.bf16.mxu0 0
    %1079 = vmatpush1.bf16.msra.mxu0 %v922
    %1080 = vmatprep.subr.bf16.mxu0 0
    %1081 = vmatpush1.bf16.msra.mxu0 %v921
    %1082 = vmatprep.subr.bf16.mxu0 0
    %1083 = vmatpush2.bf16.msra.mxu0 %v936
    %1084 = vmatprep.subr.bf16.mxu0 0
    %1085 = vmatpush2.bf16.msra.mxu0 %v935
    %1086 = vmatprep.subr.bf16.mxu0 0
    %1087 = vmatpush2.bf16.msra.mxu0 %v934
    %1088 = vmatprep.subr.bf16.mxu0 0
    %1089 = vmatpush2.bf16.msra.mxu0 %v933
    %1090 = vmatprep.subr.bf16.mxu0 0
    %1091 = vmatpush2.bf16.msra.mxu0 %v932
    %1092 = vmatprep.subr.bf16.mxu0 0
    %1093 = vmatpush2.bf16.msra.mxu0 %v931
    %1094 = vmatprep.subr.bf16.mxu0 0
    %1095 = vmatpush2.bf16.msra.mxu0 %v930
    %1096 = vmatprep.subr.bf16.mxu0 0
    %1097 = vmatpush2.bf16.msra.mxu0 %v929
    %1098 = vmatprep.mubr.bf16.mxu0 %v678
    %1099 = vmatmul.mubr.bf16.gmra.mxu0 %v677
    %v1100 = vpop.f32.mrf.mxu0
    %v1101 = vadd.f32 %v1004, %v1100
    %v1102 = vpop.f32.mrf.mxu0
    %v1103 = vpop.f32.mrf.mxu0
    %v1104 = vadd.f32 %v1007, %v1103
    %v1105 = vpop.f32.mrf.mxu0
    %1106 = vmatprep.mubr.bf16.mxu0 %v682
    %1107 = vmatmul.mubr.bf16.gmra.mxu0 %v681
    %v1108 = vpop.f32.mrf.mxu0
    %v1109 = vadd.f32 %v1012, %v1108
    %v1110 = vpop.f32.mrf.mxu0
    %v1111 = vpop.f32.mrf.mxu0
    %v1112 = vadd.f32 %v1015, %v1111
    %v1113 = vpop.f32.mrf.mxu0
    %1114 = vmatprep.mubr.bf16.mxu0 %v686
    %1115 = vmatmul.mubr.bf16.gmra.mxu0 %v685
    %v1116 = vpop.f32.mrf.mxu0
    %v1117 = vadd.f32 %v1020, %v1116
    %v1118 = vpop.f32.mrf.mxu0
    %v1119 = vpop.f32.mrf.mxu0
    %v1120 = vadd.f32 %v1023, %v1119
    %v1121 = vpop.f32.mrf.mxu0
    %1122 = vmatprep.mubr.bf16.mxu0 %v690
    %1123 = vmatmul.mubr.bf16.gmra.mxu0 %v689
    %v1124 = vpop.f32.mrf.mxu0
    %v1125 = vadd.f32 %v1028, %v1124
    %v1126 = vpop.f32.mrf.mxu0
    %v1127 = vpop.f32.mrf.mxu0
    %v1128 = vadd.f32 %v1031, %v1127
    %v1129 = vpop.f32.mrf.mxu0
    %1130 = vmatprep.mubr.bf16.mxu0 %v694
    %1131 = vmatmul.mubr.bf16.gmra.mxu0 %v693
    %v1132 = vpop.f32.mrf.mxu0
    %v1133 = vadd.f32 %v1036, %v1132
    %v1134 = vpop.f32.mrf.mxu0
    %v1135 = vpop.f32.mrf.mxu0
    %v1136 = vadd.f32 %v1039, %v1135
    %v1137 = vpop.f32.mrf.mxu0
    %1138 = vmatprep.mubr.bf16.mxu0 %v698
    %1139 = vmatmul.mubr.bf16.gmra.mxu0 %v697
    %v1140 = vpop.f32.mrf.mxu0
    %v1141 = vadd.f32 %v1044, %v1140
    %v1142 = vpop.f32.mrf.mxu0
    %v1143 = vpop.f32.mrf.mxu0
    %v1144 = vadd.f32 %v1047, %v1143
    %v1145 = vpop.f32.mrf.mxu0
    %1146 = vmatprep.mubr.bf16.mxu0 %v702
    %1147 = vmatmul.mubr.bf16.gmra.mxu0 %v701
    %v1148 = vpop.f32.mrf.mxu0
    %v1149 = vadd.f32 %v1052, %v1148
    %v1150 = vpop.f32.mrf.mxu0
    %v1151 = vpop.f32.mrf.mxu0
    %v1152 = vadd.f32 %v1055, %v1151
    %v1153 = vpop.f32.mrf.mxu0
    %1154 = vmatprep.mubr.bf16.mxu0 %v706
    %1155 = vmatmul.mubr.bf16.gmra.mxu0 %v705
    %v1156 = vpop.f32.mrf.mxu0
    %v1157 = vadd.f32 %v1060, %v1156
    %v1158 = vpop.f32.mrf.mxu0
    %v1159 = vpop.f32.mrf.mxu0
    %v1160 = vadd.f32 %v1063, %v1159
    %v1161 = vpop.f32.mrf.mxu0
    %1162 = vdwg.mxu0
    %v1163 = vpack.c.bf16 %v1104, %v1101
    %v1164 = vpack.c.bf16 %v1112, %v1109
    %v1165 = vpack.c.bf16 %v1120, %v1117
    %v1166 = vpack.c.bf16 %v1128, %v1125
    %v1167 = vpack.c.bf16 %v1136, %v1133
    %v1168 = vpack.c.bf16 %v1144, %v1141
    %v1169 = vpack.c.bf16 %v1152, %v1149
    %v1170 = vpack.c.bf16 %v1160, %v1157
    %v1179 = vunpack.c.l.b16 %v1163
    %v1180 = vunpack.c.h.b16 %v1163
    %v1181 = vunpack.c.l.b16 %v1164
    %v1182 = vunpack.c.h.b16 %v1164
    %v1183 = vunpack.c.l.b16 %v1165
    %v1184 = vunpack.c.h.b16 %v1165
    %v1185 = vunpack.c.l.b16 %v1166
    %v1186 = vunpack.c.h.b16 %v1166
    %v1187 = vunpack.c.l.b16 %v1167
    %v1188 = vunpack.c.h.b16 %v1167
    %v1189 = vunpack.c.l.b16 %v1168
    %v1190 = vunpack.c.h.b16 %v1168
    %v1191 = vunpack.c.l.b16 %v1169
    %v1192 = vunpack.c.h.b16 %v1169
    %v1193 = vunpack.c.l.b16 %v1170
    %v1194 = vunpack.c.h.b16 %v1170
    %v1195 = vpack.c.b16 %v1179, %v1179
    %v1196 = vpack.c.b16 %v1180, %v1180
    %v1197 = vpack.c.b16 %v1181, %v1181
    %v1198 = vpack.c.b16 %v1182, %v1182
    %v1199 = vpack.c.b16 %v1183, %v1183
    %v1200 = vpack.c.b16 %v1184, %v1184
    %v1201 = vpack.c.b16 %v1185, %v1185
    %v1202 = vpack.c.b16 %v1186, %v1186
    %v1203 = vpack.c.b16 %v1187, %v1187
    %v1204 = vpack.c.b16 %v1188, %v1188
    %v1205 = vpack.c.b16 %v1189, %v1189
    %v1206 = vpack.c.b16 %v1190, %v1190
    %v1207 = vpack.c.b16 %v1191, %v1191
    %v1208 = vpack.c.b16 %v1192, %v1192
    %v1209 = vpack.c.b16 %v1193, %v1193
    %v1210 = vpack.c.b16 %v1194, %v1194
    %1227 = vst [vmem:[#allocation10] sm:$0xf] %v1195
    %1228 = vst [vmem:[#allocation10 + $0x4] sm:$0xf] %v1196
    %1229 = vst [vmem:[#allocation10 + $0x8] sm:$0xf] %v1197
    %1230 = vst [vmem:[#allocation10 + $0xc] sm:$0xf] %v1198
    %1231 = vst [vmem:[#allocation10 + $0x10] sm:$0xf] %v1199
    %1232 = vst [vmem:[#allocation10 + $0x14] sm:$0xf] %v1200
    %1233 = vst [vmem:[#allocation10 + $0x18] sm:$0xf] %v1201
    %1234 = vst [vmem:[#allocation10 + $0x1c] sm:$0xf] %v1202
    %1235 = vst [vmem:[#allocation10 + $0x20] sm:$0xf] %v1203
    %1236 = vst [vmem:[#allocation10 + $0x24] sm:$0xf] %v1204
    %1237 = vst [vmem:[#allocation10 + $0x28] sm:$0xf] %v1205
    %1238 = vst [vmem:[#allocation10 + $0x2c] sm:$0xf] %v1206
    %1239 = vst [vmem:[#allocation10 + $0x30] sm:$0xf] %v1207
    %1240 = vst [vmem:[#allocation10 + $0x34] sm:$0xf] %v1208
    %1241 = vst [vmem:[#allocation10 + $0x38] sm:$0xf] %v1209
    %1242 = vst [vmem:[#allocation10 + $0x3c] sm:$0xf] %v1210
    // Predicated region
    $region38: #{tpu_custom_call.1} parent=1 // pred_check
      _
    $region39: #{tpu_custom_call.1} parent=1 // pred_check_branch
      %1244 = sbr.rel (0) target = $region41
    $region40: #{tpu_custom_call.1} parent=1 // pred_region
      %s1246 = ssub.s32 1024, 1024
      %1247 = vsyncadd [#allocation4], %s1246
      %s1248 = sshll.u32 [#allocation10], 4
      %s1249 = int_to_ptr.vmem [resolvable:$true] %s1248
      %1254 = dma.vmem_to_hbm [thread:$0]  %s1249, 1024, %s5, [#allocation4], 64, 64, 4
    $region41: #{tpu_custom_call.1} parent=1 // pred_fallthru
      _
    // Predicated region
    $region42: #{tpu_custom_call.1} parent=1 // pred_check
      _
    $region43: #{tpu_custom_call.1} parent=1 // pred_check_branch
      %1256 = sbr.rel (0) target = $region45
    $region44: #{tpu_custom_call.1} parent=1 // pred_region
      %1257 = dma.done [#allocation4], 1024
    $region45: #{tpu_custom_call.1} parent=1 // pred_fallthru
      _
    %1258 = vsyncpa [#allocation3], 1
    %1259 = vsyncpa [#allocation6], 1
    %1260 = vsyncpa [#allocation9], 1
    %1261 = vsyncpa [#allocation4], 1

</llo_original>
